<compile_context>
chip_gen: v7x
topology: tpu7x:2x2x1
jax: 0.10.0
libtpu: 0.0.40
codegen_flags: <defaults>
</compile_context>

<pallas_src>
import math
import functools

import jax
import jax.numpy as jnp
from jax import lax
from jax.experimental import pallas as pl
from jax.experimental.pallas import tpu as pltpu


VMEM_LIMIT = 48 * 1024 * 1024   # above the 32 MiB scoped default, below v7x physical


# ----------------------------- in-kernel math ------------------------------

def _gelu(x):
    # tanh-form GELU (EUP tanh) — matches the erf-GELU of the reference to ~1e-3.
    c = math.sqrt(2.0 / math.pi)
    return 0.5 * x * (1.0 + jnp.tanh(c * (x + 0.044715 * x * x * x)))


def _layernorm(x, gamma, beta, eps=1e-12):
    u = jnp.mean(x, axis=-1, keepdims=True)
    xc = x - u
    s = jnp.mean(xc * xc, axis=-1, keepdims=True)
    return gamma * (xc * lax.rsqrt(s + eps)) + beta


def _pick_tile(dim, target):
    # Largest "nice" tile: use the target if it divides the dim, else fall back
    # to the full extent (small/toy shapes).
    return target if dim % target == 0 else dim


# ------------------------------ Pallas kernels ------------------------------

def gemm_kernel(x_ref, w_ref, b_ref, o_ref, acc_ref, *, act):
    # grid = (M tiles, K tiles); K innermost reduction with f32 accumulator.
    @pl.when(pl.program_id(1) == 0)
    def _():
        acc_ref[...] = jnp.zeros_like(acc_ref)

    acc_ref[...] += jnp.dot(x_ref[...].astype(jnp.bfloat16), w_ref[...],
                            preferred_element_type=jnp.float32)

    @pl.when(pl.program_id(1) == pl.num_programs(1) - 1)
    def _():
        y = acc_ref[...] + b_ref[...]
        if act == 'gelu':
            y = _gelu(y)
        elif act == 'tanh':
            y = jnp.tanh(y)
        o_ref[...] = y.astype(o_ref.dtype)


def gemm_res_ln_kernel(x_ref, w_ref, b_ref, res_ref, g_ref, be_ref, o_ref, acc_ref):
    # GEMM with fused bias + residual-add + LayerNorm epilogue (per row tile).
    @pl.when(pl.program_id(1) == 0)
    def _():
        acc_ref[...] = jnp.zeros_like(acc_ref)

    acc_ref[...] += jnp.dot(x_ref[...].astype(jnp.bfloat16), w_ref[...],
                            preferred_element_type=jnp.float32)

    @pl.when(pl.program_id(1) == pl.num_programs(1) - 1)
    def _():
        y = acc_ref[...] + b_ref[...] + res_ref[...]
        o_ref[...] = _layernorm(y, g_ref[...], be_ref[...]).astype(o_ref.dtype)


def layernorm_kernel(x_ref, g_ref, b_ref, o_ref):
    o_ref[...] = _layernorm(x_ref[...], g_ref[...], b_ref[...]).astype(o_ref.dtype)


def attn_kernel(bias_ref, q_ref, k_ref, v_ref, o_ref, m_sc, l_sc, acc_sc,
                *, num_heads, head_size, scale):
    # grid = (batch, q tiles, kv tiles); online softmax over the kv axis.
    ki = pl.program_id(2)

    @pl.when(ki == 0)
    def _():
        m_sc[...] = jnp.full_like(m_sc, -1e30)
        l_sc[...] = jnp.zeros_like(l_sc)
        acc_sc[...] = jnp.zeros_like(acc_sc)

    tq = q_ref.shape[1]
    tk = k_ref.shape[1]
    # (t, H) -> (heads, t, d); all heads handled by one batched einsum.
    qh = q_ref[0].reshape(tq, num_heads, head_size).transpose(1, 0, 2).astype(jnp.bfloat16)
    kh = k_ref[0].reshape(tk, num_heads, head_size).transpose(1, 0, 2).astype(jnp.bfloat16)
    vh = v_ref[0].reshape(tk, num_heads, head_size).transpose(1, 0, 2).astype(jnp.bfloat16)

    s = jnp.einsum('hqd,hkd->hqk', qh, kh,
                   preferred_element_type=jnp.float32) * scale
    s = s + bias_ref[0]                       # additive key-mask bias (0 / -1e30)

    m_prev = m_sc[...]
    m_new = jnp.maximum(m_prev, jnp.max(s, axis=-1, keepdims=True))
    alpha = jnp.exp(m_prev - m_new)
    p = jnp.exp(s - m_new)
    l_sc[...] = alpha * l_sc[...] + jnp.sum(p, axis=-1, keepdims=True)
    acc_sc[...] = alpha * acc_sc[...] + jnp.einsum(
        'hqk,hkd->hqd', p.astype(jnp.bfloat16), vh,
        preferred_element_type=jnp.float32)
    m_sc[...] = m_new

    @pl.when(ki == pl.num_programs(2) - 1)
    def _():
        out = acc_sc[...] * pl.reciprocal(l_sc[...], approx=True)   # (h, tq, d)
        o_ref[0] = out.transpose(1, 0, 2).reshape(
            tq, num_heads * head_size).astype(o_ref.dtype)


# ------------------------------ pallas wrappers -----------------------------

def linear_pallas(x2d, w_bf16, b, act='none'):
    M, K = x2d.shape
    N = w_bf16.shape[1]
    tm = _pick_tile(M, 256)
    tk = _pick_tile(K, 512)
    grid = (M // tm, K // tk)
    kern = functools.partial(gemm_kernel, act=act)
    return pl.pallas_call(
        kern,
        out_shape=jax.ShapeDtypeStruct((M, N), jnp.float32),
        grid_spec=pltpu.PrefetchScalarGridSpec(
            num_scalar_prefetch=0, grid=grid,
            in_specs=[
                pl.BlockSpec((tm, tk), lambda m, k: (m, k)),
                pl.BlockSpec((tk, N), lambda m, k: (k, 0)),
                pl.BlockSpec((1, N), lambda m, k: (0, 0)),
            ],
            out_specs=pl.BlockSpec((tm, N), lambda m, k: (m, 0)),
            scratch_shapes=[pltpu.VMEM((tm, N), jnp.float32)]),
        compiler_params=pltpu.CompilerParams(
            dimension_semantics=("parallel", "arbitrary"),
            vmem_limit_bytes=VMEM_LIMIT),
    )(x2d, w_bf16, b)


def linear_res_ln_pallas(x2d, w_bf16, b, res2d, gamma, beta):
    M, K = x2d.shape
    N = w_bf16.shape[1]
    tm = _pick_tile(M, 256)
    tk = _pick_tile(K, 512)
    grid = (M // tm, K // tk)
    # TODO(synk): could alias res2d with the output via input_output_aliases to
    # drop one HBM buffer per layer; kept un-aliased for simplicity.
    return pl.pallas_call(
        gemm_res_ln_kernel,
        out_shape=jax.ShapeDtypeStruct((M, N), jnp.float32),
        grid_spec=pltpu.PrefetchScalarGridSpec(
            num_scalar_prefetch=0, grid=grid,
            in_specs=[
                pl.BlockSpec((tm, tk), lambda m, k: (m, k)),
                pl.BlockSpec((tk, N), lambda m, k: (k, 0)),
                pl.BlockSpec((1, N), lambda m, k: (0, 0)),
                pl.BlockSpec((tm, N), lambda m, k: (m, 0)),
                pl.BlockSpec((1, N), lambda m, k: (0, 0)),
                pl.BlockSpec((1, N), lambda m, k: (0, 0)),
            ],
            out_specs=pl.BlockSpec((tm, N), lambda m, k: (m, 0)),
            scratch_shapes=[pltpu.VMEM((tm, N), jnp.float32)]),
        compiler_params=pltpu.CompilerParams(
            dimension_semantics=("parallel", "arbitrary"),
            vmem_limit_bytes=VMEM_LIMIT),
    )(x2d, w_bf16, b, res2d, gamma, beta)


def layernorm_pallas(x2d, gamma, beta):
    M, H = x2d.shape
    tm = _pick_tile(M, 512)
    return pl.pallas_call(
        layernorm_kernel,
        out_shape=jax.ShapeDtypeStruct((M, H), jnp.float32),
        grid_spec=pltpu.PrefetchScalarGridSpec(
            num_scalar_prefetch=0, grid=(M // tm,),
            in_specs=[
                pl.BlockSpec((tm, H), lambda m: (m, 0)),
                pl.BlockSpec((1, H), lambda m: (0, 0)),
                pl.BlockSpec((1, H), lambda m: (0, 0)),
            ],
            out_specs=pl.BlockSpec((tm, H), lambda m: (m, 0))),
        compiler_params=pltpu.CompilerParams(
            dimension_semantics=("parallel",),
            vmem_limit_bytes=VMEM_LIMIT),
    )(x2d, gamma, beta)


def attention_pallas(q, k, v, bias, num_heads):
    B, S, H = q.shape
    d = H // num_heads
    tq = _pick_tile(S, 128)
    tkv = _pick_tile(S, 128)
    grid = (B, S // tq, S // tkv)
    kern = functools.partial(attn_kernel, num_heads=num_heads, head_size=d,
                             scale=1.0 / math.sqrt(d))
    return pl.pallas_call(
        kern,
        out_shape=jax.ShapeDtypeStruct((B, S, H), jnp.float32),
        grid_spec=pltpu.PrefetchScalarGridSpec(
            num_scalar_prefetch=0, grid=grid,
            in_specs=[
                pl.BlockSpec((1, 1, tkv), lambda b, qi, ki: (b, 0, ki)),
                pl.BlockSpec((1, tq, H), lambda b, qi, ki: (b, qi, 0)),
                pl.BlockSpec((1, tkv, H), lambda b, qi, ki: (b, ki, 0)),
                pl.BlockSpec((1, tkv, H), lambda b, qi, ki: (b, ki, 0)),
            ],
            out_specs=pl.BlockSpec((1, tq, H), lambda b, qi, ki: (b, qi, 0)),
            scratch_shapes=[
                pltpu.VMEM((num_heads, tq, 1), jnp.float32),   # running max
                pltpu.VMEM((num_heads, tq, 1), jnp.float32),   # running sum
                pltpu.VMEM((num_heads, tq, d), jnp.float32),   # accumulator
            ]),
        compiler_params=pltpu.CompilerParams(
            dimension_semantics=("parallel", "parallel", "arbitrary"),
            vmem_limit_bytes=VMEM_LIMIT),
    )(bias, q, k, v)


# ------------------------------ model setup ---------------------------------

def init_bert_params(key, cfg):
    std = cfg['initializer_range']
    H, I = cfg['hidden_size'], cfg['intermediate_size']
    keys = iter(jax.random.split(key, 8 + 8 * cfg['num_hidden_layers']))

    def nrm(shape):
        return jax.random.normal(next(keys), shape, jnp.float32) * std

    params = {}
    params['tok_emb'] = nrm((cfg['vocab_size'], H)).at[0].set(0.0)   # padding_idx=0
    params['pos_emb'] = nrm((cfg['max_position_embeddings'], H))
    params['typ_emb'] = nrm((cfg['type_vocab_size'], H))
    params['emb_ln_g'] = jnp.ones((1, H), jnp.float32)
    params['emb_ln_b'] = jnp.zeros((1, H), jnp.float32)

    layers = []
    for _ in range(cfg['num_hidden_layers']):
        wq, wk, wv = nrm((H, H)), nrm((H, H)), nrm((H, H))
        layers.append(dict(
            # fused QKV projection weight, stored bf16 for the MXU
            wqkv=jnp.concatenate([wq, wk, wv], axis=1).astype(jnp.bfloat16),
            bqkv=jnp.zeros((1, 3 * H), jnp.float32),
            wo=nrm((H, H)).astype(jnp.bfloat16), bo=jnp.zeros((1, H), jnp.float32),
            g1=jnp.ones((1, H), jnp.float32), b1=jnp.zeros((1, H), jnp.float32),
            we=nrm((H, I)).astype(jnp.bfloat16), be=jnp.zeros((1, I), jnp.float32),
            wc=nrm((I, H)).astype(jnp.bfloat16), bc=jnp.zeros((1, H), jnp.float32),
            g2=jnp.ones((1, H), jnp.float32), b2=jnp.zeros((1, H), jnp.float32),
        ))
    params['layers'] = layers
    params['pool_w'] = nrm((H, H)).astype(jnp.bfloat16)
    params['pool_b'] = jnp.zeros((1, H), jnp.float32)
    return params


def bert_forward(params, cfg, input_ids, attention_mask=None, token_type_ids=None):
    B, S = input_ids.shape
    H = cfg['hidden_size']
    nh = cfg['num_attention_heads']
    if attention_mask is None:
        attention_mask = jnp.ones((B, S), jnp.int32)
    if token_type_ids is None:
        token_type_ids = jnp.zeros_like(input_ids)
    position_ids = jnp.arange(S, dtype=jnp.int32)[None, :]

    # Embedding gathers are plain-JAX glue; all dense math below is Pallas.
    x = (params['tok_emb'][input_ids]
         + params['pos_emb'][position_ids]
         + params['typ_emb'][token_type_ids])                       # (B, S, H) f32
    # TODO(synk): dropout layers are identity here (inference semantics).
    x2d = layernorm_pallas(x.reshape(B * S, H),
                           params['emb_ln_g'], params['emb_ln_b'])

    # Additive attention bias over key positions: 0 keep, -1e30 masked.
    bias = ((attention_mask.astype(jnp.float32) - 1.0) * 1e30).reshape(B, 1, S)

    for lp in params['layers']:
        # Fused QKV projection (single pass over x).
        qkv = linear_pallas(x2d, lp['wqkv'], lp['bqkv']).reshape(B, S, 3 * H)
        q, k, v = qkv[..., :H], qkv[..., H:2 * H], qkv[..., 2 * H:]
        # Flash-style multi-head attention (heads batched, KV axis tiled).
        a = attention_pallas(q, k, v, bias, nh)                     # (B, S, H)
        # attn_out projection + residual + LayerNorm1 (fused epilogue).
        h1 = linear_res_ln_pallas(a.reshape(B * S, H), lp['wo'], lp['bo'],
                                  x2d, lp['g1'], lp['b1'])
        # FFN: expansion + GELU, then contraction + residual + LayerNorm2.
        m1 = linear_pallas(h1, lp['we'], lp['be'], act='gelu')
        x2d = linear_res_ln_pallas(m1, lp['wc'], lp['bc'],
                                   h1, lp['g2'], lp['b2'])

    seq_out = x2d.reshape(B, S, H)
    pooled = linear_pallas(seq_out[:, 0], params['pool_w'], params['pool_b'],
                           act='tanh')
    return seq_out, pooled


if __name__ == "__main__":
    cfg = dict(vocab_size=50, hidden_size=32, num_hidden_layers=2,
               num_attention_heads=4, intermediate_size=64,
               max_position_embeddings=16, type_vocab_size=2,
               initializer_range=0.02)

    key = jax.random.PRNGKey(0)
    pkey, ikey = jax.random.split(key)
    params = init_bert_params(pkey, cfg)

    B, S = 2, 8
    input_ids = jax.random.randint(ikey, (B, S), 1, cfg['vocab_size'], dtype=jnp.int32)
    attention_mask = jnp.ones((B, S), jnp.int32).at[1, -1].set(0)

    x, o = bert_forward(params, cfg, input_ids, attention_mask)
    jax.block_until_ready((x, o))
    assert x.shape == (B, S, cfg['hidden_size']) and o.shape == (B, cfg['hidden_size'])
    assert bool(jnp.all(jnp.isfinite(x))) and bool(jnp.all(jnp.isfinite(o)))
    print("KERNEL_OK")
</pallas_src>

<mosaic_0001>
module attributes {stable_mosaic.version = 11 : i64} {
  func.func @layernorm_kernel(%arg0: i32, %arg1: memref<16x32xf32, #tpu.memory_space<vmem>>, %arg2: memref<1x32xf32, #tpu.memory_space<vmem>>, %arg3: memref<1x32xf32, #tpu.memory_space<vmem>>, %arg4: memref<16x32xf32, #tpu.memory_space<vmem>>) attributes {dimension_semantics = [#tpu.dimension_semantics<parallel>], iteration_bounds = array<i64: 1>, scalar_prefetch = 0 : i64, scratch_operands = 0 : i64, tpu.core_type = #tpu.core_type<tc>, window_params = [{transform_indices = @transform_0, window_bounds = array<i64: 16, 32>}, {pipeline_mode = #tpu.pipeline_mode<synchronous>, transform_indices = @transform_1, window_bounds = array<i64: 1, 32>}, {pipeline_mode = #tpu.pipeline_mode<synchronous>, transform_indices = @transform_2, window_bounds = array<i64: 1, 32>}, {transform_indices = @transform_3, window_bounds = array<i64: 16, 32>}]} {
    %c0 = arith.constant 0 : index
    %c0_0 = arith.constant 0 : index
    %0 = vector.load %arg1[%c0, %c0_0] : memref<16x32xf32, #tpu.memory_space<vmem>>, vector<16x32xf32>
    %c0_1 = arith.constant 0 : index
    %c0_2 = arith.constant 0 : index
    %1 = vector.load %arg2[%c0_1, %c0_2] : memref<1x32xf32, #tpu.memory_space<vmem>>, vector<1x32xf32>
    %c0_3 = arith.constant 0 : index
    %c0_4 = arith.constant 0 : index
    %2 = vector.load %arg3[%c0_3, %c0_4] : memref<1x32xf32, #tpu.memory_space<vmem>>, vector<1x32xf32>
    %cst = arith.constant dense<0.000000e+00> : vector<16xf32>
    %3 = vector.multi_reduction <add>, %0, %cst [1] : vector<16x32xf32> to vector<16xf32>
    %4 = vector.shape_cast %3 : vector<16xf32> to vector<16x1xf32>
    %cst_5 = arith.constant 3.200000e+01 : f32
    %5 = vector.broadcast %cst_5 : f32 to vector<16x1xf32>
    %6 = arith.divf %4, %5 : vector<16x1xf32>
    %7 = vector.broadcast %6 : vector<16x1xf32> to vector<16x32xf32>
    %8 = arith.subf %0, %7 : vector<16x32xf32>
    %9 = arith.mulf %8, %8 : vector<16x32xf32>
    %cst_6 = arith.constant dense<0.000000e+00> : vector<16xf32>
    %10 = vector.multi_reduction <add>, %9, %cst_6 [1] : vector<16x32xf32> to vector<16xf32>
    %11 = vector.shape_cast %10 : vector<16xf32> to vector<16x1xf32>
    %cst_7 = arith.constant 3.200000e+01 : f32
    %12 = vector.broadcast %cst_7 : f32 to vector<16x1xf32>
    %13 = arith.divf %11, %12 : vector<16x1xf32>
    %cst_8 = arith.constant 9.99999996E-13 : f32
    %14 = vector.broadcast %cst_8 : f32 to vector<16x1xf32>
    %15 = arith.addf %13, %14 : vector<16x1xf32>
    %16 = math.rsqrt %15 : vector<16x1xf32>
    %17 = vector.broadcast %16 : vector<16x1xf32> to vector<16x32xf32>
    %18 = arith.mulf %8, %17 : vector<16x32xf32>
    %19 = vector.broadcast %1 : vector<1x32xf32> to vector<16x32xf32>
    %20 = arith.mulf %19, %18 : vector<16x32xf32>
    %21 = vector.broadcast %2 : vector<1x32xf32> to vector<16x32xf32>
    %22 = arith.addf %20, %21 : vector<16x32xf32>
    %c0_9 = arith.constant 0 : index
    %c0_10 = arith.constant 0 : index
    %23 = vector.load %arg4[%c0_9, %c0_10] : memref<16x32xf32, #tpu.memory_space<vmem>>, vector<16x32xf32>
    tpu.vector_store %arg4[%c0_9, %c0_10], %22 {strides = array<i32>} : memref<16x32xf32, #tpu.memory_space<vmem>>, vector<16x32xf32>,
    return
  }
  func.func @transform_0(%arg0: i32) -> (i32, i32) {
    %c0_i32 = arith.constant 0 : i32
    %c0_i32_0 = arith.constant 0 : i32
    return %arg0, %c0_i32 : i32, i32
  }
  func.func @transform_1(%arg0: i32) -> (i32, i32) {
    %c0_i32 = arith.constant 0 : i32
    %c0_i32_0 = arith.constant 0 : i32
    %c0_i32_1 = arith.constant 0 : i32
    return %c0_i32, %c0_i32_0 : i32, i32
  }
  func.func @transform_2(%arg0: i32) -> (i32, i32) {
    %c0_i32 = arith.constant 0 : i32
    %c0_i32_0 = arith.constant 0 : i32
    %c0_i32_1 = arith.constant 0 : i32
    return %c0_i32, %c0_i32_0 : i32, i32
  }
  func.func @transform_3(%arg0: i32) -> (i32, i32) {
    %c0_i32 = arith.constant 0 : i32
    %c0_i32_0 = arith.constant 0 : i32
    return %arg0, %c0_i32 : i32, i32
  }
}

</mosaic_0001>

<llo_original>
// kernel: tpu_custom_call.1
$region0: #{tpu_custom_call.1}
  #allocation0 [shape = 'u32[]', space=smem, size = 0x4, offset = 0x4, fixed_abs, tag = 'smem constant byte address 0x4 - core index']
  #allocation1 [shape = 'u32[144,128]{1,0:T(1,128)}', space=vmem, size = 0x12000, scoped, tag = 'internal scratch']
  %s0 = inlined_call_operand.hbm [shape: f32[16,32], index: 0, kind: input, shape index: {}]
  %s1 = inlined_call_operand.vmem [shape: f32[1,32], index: 1, kind: input, shape index: {}]
  %s2 = inlined_call_operand.vmem [shape: f32[1,32], index: 2, kind: input, shape index: {}]
  %s3 = inlined_call_operand.hbm [shape: f32[16,32], index: 3, kind: output, shape index: {}]
  %s4 = sld [smem:[#allocation0]]
  $region26: #{tpu_custom_call.1} parent=0
    _
  %s6 = ssub.s32 1, %s4
  %s7 = scalar_select 0, %s6, %s4
  $region1: #{tpu_custom_call.1} parent=0
    #allocation2 [shape = 'u8[8192]{0}', space=vmem, size = 0x2000, scoped, tag = 'input window, operand 0, single buffered']
    #allocation3 [shape = 's32[1]{0}', space=sflag, size = 0x4, scoped, tag = 'scoped memory for tpu_custom_call.1']
    #allocation4 [shape = 's32[1]{0}', space=sflag, size = 0x4, scoped, tag = 'scoped memory for tpu_custom_call.1']
    #allocation5 [shape = 'u8[8192]{0}', space=vmem, size = 0x2000, scoped, tag = 'output window, operand 0, single buffered']
    %8 = vsyncpa [#allocation3], 0
    %9 = vsyncpa [#allocation4], 0
    // Predicated region
    $region2: #{tpu_custom_call.1} parent=1 // pred_check
      _
    $region3: #{tpu_custom_call.1} parent=1 // pred_check_branch
      %11 = sbr.rel (0) target = $region5
    $region4: #{tpu_custom_call.1} parent=1 // pred_region
      %s13 = ssub.s32 256, 256
      %14 = vsyncadd [#allocation3], %s13
      %s15 = sshll.u32 [#allocation2], 4
      %s16 = int_to_ptr.vmem [resolvable:$true] %s15
      %21 = dma.hbm_to_vmem [thread:$0]  %s0, 256, %s16, [#allocation3], 128, 128, 8
    $region5: #{tpu_custom_call.1} parent=1 // pred_fallthru
      _
    // Predicated region
    $region6: #{tpu_custom_call.1} parent=1 // pred_check
      _
    $region7: #{tpu_custom_call.1} parent=1 // pred_check_branch
      %23 = sbr.rel (0) target = $region9
    $region8: #{tpu_custom_call.1} parent=1 // pred_region
      _
    $region9: #{tpu_custom_call.1} parent=1 // pred_fallthru
      _
    // Predicated region
    $region10: #{tpu_custom_call.1} parent=1 // pred_check
      _
    $region11: #{tpu_custom_call.1} parent=1 // pred_check_branch
      %25 = sbr.rel (0) target = $region13
    $region12: #{tpu_custom_call.1} parent=1 // pred_region
      _
    $region13: #{tpu_custom_call.1} parent=1 // pred_fallthru
      _
    // Predicated region
    $region14: #{tpu_custom_call.1} parent=1 // pred_check
      _
    $region15: #{tpu_custom_call.1} parent=1 // pred_check_branch
      %27 = sbr.rel (0) target = $region17
    $region16: #{tpu_custom_call.1} parent=1 // pred_region
      %28 = dma.done [#allocation3], 256
    $region17: #{tpu_custom_call.1} parent=1 // pred_fallthru
      _
    %v29 = vld [vmem:[#allocation2] sm:$0xff]
    %v30 = vld [vmem:[#allocation2 + $0x8] sm:$0xff]
    %v31 = vld [vmem:[%s1] sm:$0x1]
    %v32 = vld [vmem:[%s2] sm:$0x1]
    %vm33 = vcmask 261120
    %v34 = vsel %vm33, %v29, 0.0
    %35 = vadd.xlane.f32.xlu0 %v34
    %v36 = vpop.xlane.xlu0 %35
    %v37 = vsel %vm33, %v30, 0.0
    %38 = vadd.xlane.f32.xlu0 %v37
    %v39 = vpop.xlane.xlu0 %38
    %v40 = vrcp.pop 32.0
    %v41 = vmul.f32 %v36, %v40
    %v42 = vmul.f32 %v39, %v40
    %v43 = vsub.f32 %v29, %v41
    %v44 = vsub.f32 %v30, %v42
    %v45 = vmul.f32 %v43, %v43
    %v46 = vmul.f32 %v44, %v44
    %v47 = vsel %vm33, %v45, 0.0
    %48 = vadd.xlane.f32.xlu0 %v47
    %v49 = vpop.xlane.xlu0 %48
    %v50 = vsel %vm33, %v46, 0.0
    %51 = vadd.xlane.f32.xlu0 %v50
    %v52 = vpop.xlane.xlu0 %51
    %v53 = vmul.f32 %v49, %v40
    %v54 = vmul.f32 %v52, %v40
    %v55 = vadd.f32 %v53, 1e-12
    %v56 = vadd.f32 %v54, 1e-12
    %v57 = vrsqrt.pop %v55
    %v58 = vrsqrt.pop %v56
    %v59 = vmul.f32 %v43, %v57
    %v60 = vmul.f32 %v44, %v58
    %v62 = vlaneseq
    %v63 = vshrl.u32 %v62, 7
    %v64 = vsub.s32 0, %v63
    %v65 = vrot.slane %v31, %v64
    %v67 = vmul.f32 %v65, %v59
    %v68 = vmul.f32 %v65, %v60
    %v70 = vlaneseq
    %v71 = vshrl.u32 %v70, 7
    %v72 = vsub.s32 0, %v71
    %v73 = vrot.slane %v32, %v72
    %v75 = vadd.f32 %v67, %v73
    %v76 = vadd.f32 %v68, %v73
    %77 = vst.msk [vmem:[#allocation5] sm:$0xff] %vm33, %v75
    %78 = vst.msk [vmem:[#allocation5 + $0x8] sm:$0xff] %vm33, %v76
    // Predicated region
    $region18: #{tpu_custom_call.1} parent=1 // pred_check
      _
    $region19: #{tpu_custom_call.1} parent=1 // pred_check_branch
      %80 = sbr.rel (0) target = $region21
    $region20: #{tpu_custom_call.1} parent=1 // pred_region
      %s82 = ssub.s32 256, 256
      %83 = vsyncadd [#allocation4], %s82
      %s84 = sshll.u32 [#allocation5], 4
      %s85 = int_to_ptr.vmem [resolvable:$true] %s84
      %90 = dma.vmem_to_hbm [thread:$0]  %s85, 256, %s3, [#allocation4], 128, 128, 8
    $region21: #{tpu_custom_call.1} parent=1 // pred_fallthru
      _
    // Predicated region
    $region22: #{tpu_custom_call.1} parent=1 // pred_check
      _
    $region23: #{tpu_custom_call.1} parent=1 // pred_check_branch
      %92 = sbr.rel (0) target = $region25
    $region24: #{tpu_custom_call.1} parent=1 // pred_region
      %93 = dma.done [#allocation4], 256
    $region25: #{tpu_custom_call.1} parent=1 // pred_fallthru
      _
    %94 = vsyncpa [#allocation3], 1
    %95 = vsyncpa [#allocation4], 1

</llo_original>
